<compile_context>
chip_gen: v7x
topology: tpu7x:2x2x1
jax: 0.10.0
libtpu: 0.0.40
codegen_flags: <defaults>
</compile_context>

<pallas_src>
import jax
import jax.numpy as jnp
from jax.experimental import pallas as pl
from jax.experimental.pallas import tpu as pltpu
import numpy as np


def rnn_kernel(tok_ref, proj_ref, whh_ref, wfc_ref, bfc_ref, out_ref):
    """Fused embedding-gather + tanh-RNN recurrence + final Linear.

    tok_ref  : (T*Bp, 1) i32  time-major token ids, batch padded to Bp
    proj_ref : (Vp, H)   f32  emb_table @ W_ih^T + (b_ih + b_hh), vocab padded
    whh_ref  : (H, H)    f32  hidden->hidden weights (right-multiply form)
    wfc_ref  : (H, Op)   f32  fc weights (right-multiply form, lane-padded)
    bfc_ref  : (1, Op)   f32  fc bias (lane-padded)
    out_ref  : (Bp, Op)  f32  logits (padded; wrapper slices to (B, O))
    """
    TB = tok_ref.shape[0]
    Bp = out_ref.shape[0]
    T = TB // Bp
    H = whh_ref.shape[0]
    Vp = proj_ref.shape[0]

    # Fused gather + input projection + bias, all folded into one small MXU
    # matmul: one-hot(token) @ proj_table selects exact rows of the projected
    # table (so bias is applied before tanh at every step, and the padding_idx
    # row contributes exactly `bias`, matching Embedding(padding_idx) = 0).
    tok = tok_ref[...]                                            # (T*Bp, 1)
    vocab_iota = jax.lax.broadcasted_iota(jnp.int32, (TB, Vp), 1)
    onehot = jnp.where(vocab_iota == tok, 1.0, 0.0).astype(jnp.float32)
    xall = jnp.dot(onehot, proj_ref[...],
                   preferred_element_type=jnp.float32)            # (T*Bp, H)

    # Only W_hh is hoisted: it sits on the serial chain every step.
    whh = whh_ref[...]

    # Fully-unrolled recurrence (T is small/static): the serial critical path
    # per step is just h @ W_hh -> add -> tanh, on static sublane-aligned
    # slices of xall.
    h = jnp.zeros((Bp, H), dtype=jnp.float32)
    for t in range(T):
        h = jnp.tanh(xall[t * Bp:(t + 1) * Bp, :]
                     + jnp.dot(h, whh, preferred_element_type=jnp.float32))

    # fc weights/bias are loaded only now, after the recurrence (already
    # resident in VMEM; the vld is off the critical path).
    out_ref[...] = (jnp.dot(h, wfc_ref[...],
                            preferred_element_type=jnp.float32)
                    + bfc_ref[...])


def rnn_forward(tokens, emb_table, w_ih_t, w_hh_t, bias, w_fc_t, b_fc,
                padding_idx=0):
    B, T = tokens.shape
    V = emb_table.shape[0]
    H = w_hh_t.shape[0]
    O = w_fc_t.shape[1]

    # Alignment padding (free in VMEM, removes masked partial stores and
    # sub-vreg operands).
    Bp = max(8, ((B + 7) // 8) * 8)          # sublane-aligned batch
    Op = ((O + 127) // 128) * 128            # lane-dense fc output
    Vp = ((V + 127) // 128) * 128            # lane-dense one-hot contraction

    # Fold the input projection and both RNN biases into the embedding table
    # once (tiny V x E x H matmul), so the kernel never sees E-sized data.
    proj_table = emb_table @ w_ih_t + bias                       # (V, H)
    proj_table = jnp.pad(proj_table, ((0, Vp - V), (0, 0)))      # (Vp, H)

    # Time-major token ids, batch padded with padding_idx; padded batch rows
    # are discarded after the kernel. Only this tiny int32 column and the
    # projected table enter the kernel -- the gather happens in-kernel.
    tok_tm = jnp.pad(tokens.T, ((0, 0), (0, Bp - B)),
                     constant_values=padding_idx)                # (T, Bp)
    tok_col = tok_tm.reshape(T * Bp, 1).astype(jnp.int32)        # (T*Bp, 1)

    wfc_p = jnp.pad(w_fc_t, ((0, 0), (0, Op - O)))               # (H, Op)
    bfc_p = jnp.pad(b_fc, ((0, 0), (0, Op - O)))                 # (1, Op)

    vmem = pl.BlockSpec(memory_space=pltpu.MemorySpace.VMEM)
    out_padded = pl.pallas_call(
        rnn_kernel,
        out_shape=jax.ShapeDtypeStruct((Bp, Op), jnp.float32),
        in_specs=[vmem] * 5,
        out_specs=vmem,
    )(tok_col, proj_table, w_hh_t, wfc_p, bfc_p)
    return out_padded[:B, :O]


def make_params(key, vocab_size, padding_idx, emb_size, hidden_size, output_size):
    """Deterministic parameter init mirroring PyTorch defaults."""
    k_emb, k_ih, k_hh, k_bih, k_bhh, k_fw, k_fb = jax.random.split(key, 7)

    # nn.Embedding: N(0, 1), padding row zeroed.
    emb_table = jax.random.normal(k_emb, (vocab_size, emb_size), jnp.float32)
    emb_table = emb_table.at[padding_idx].set(0.0)

    # nn.RNN: U(-k, k) with k = 1/sqrt(hidden_size).
    k_rnn = 1.0 / np.sqrt(hidden_size)
    w_ih = jax.random.uniform(k_ih, (hidden_size, emb_size), jnp.float32,
                              -k_rnn, k_rnn)
    w_hh = jax.random.uniform(k_hh, (hidden_size, hidden_size), jnp.float32,
                              -k_rnn, k_rnn)
    b_ih = jax.random.uniform(k_bih, (hidden_size,), jnp.float32, -k_rnn, k_rnn)
    b_hh = jax.random.uniform(k_bhh, (hidden_size,), jnp.float32, -k_rnn, k_rnn)

    # nn.Linear: U(-k, k) with k = 1/sqrt(in_features).
    k_fc = 1.0 / np.sqrt(hidden_size)
    w_fc = jax.random.uniform(k_fw, (output_size, hidden_size), jnp.float32,
                              -k_fc, k_fc)
    b_fc = jax.random.uniform(k_fb, (output_size,), jnp.float32, -k_fc, k_fc)

    # Pre-transpose to right-multiply form for the kernel.
    return dict(
        emb_table=emb_table,
        w_ih_t=w_ih.T,                                # (E, H)
        w_hh_t=w_hh.T,                                # (H, H)
        bias=(b_ih + b_hh).reshape(1, hidden_size),   # (1, H)
        w_fc_t=w_fc.T,                                # (H, O)
        b_fc=b_fc.reshape(1, output_size),            # (1, O)
    )


def reference_forward(tokens, p):
    """Pure-JAX reference with identical semantics (for verification)."""
    emb = jnp.take(p["emb_table"], tokens, axis=0)   # (B, T, E)
    B, T, _ = emb.shape
    H = p["w_hh_t"].shape[0]
    h = jnp.zeros((B, H), jnp.float32)
    for t in range(T):
        h = jnp.tanh(emb[:, t, :] @ p["w_ih_t"] + h @ p["w_hh_t"] + p["bias"])
    return h @ p["w_fc_t"] + p["b_fc"]


if __name__ == "__main__":
    # Small shapes consistent with the module's forward.
    VOCAB = 100
    PADDING_IDX = 0
    OUTPUT_SIZE = 4
    EMB_SIZE = 64
    HIDDEN_SIZE = 32
    BATCH = 2
    SEQ = 8

    key = jax.random.PRNGKey(0)
    k_tok, k_par = jax.random.split(key)

    tokens = jax.random.randint(k_tok, (BATCH, SEQ), 1, VOCAB, dtype=jnp.int32)
    # make the last token of one sequence a pad token to exercise padding_idx
    tokens = tokens.at[1, -1].set(PADDING_IDX)

    params = make_params(k_par, VOCAB, PADDING_IDX, EMB_SIZE, HIDDEN_SIZE,
                         OUTPUT_SIZE)

    fwd = jax.jit(rnn_forward)
    out = fwd(tokens, params["emb_table"], params["w_ih_t"],
              params["w_hh_t"], params["bias"], params["w_fc_t"],
              params["b_fc"])
    out = jax.block_until_ready(out)

    ref = reference_forward(tokens, params)
    np.testing.assert_allclose(np.asarray(out), np.asarray(ref),
                               rtol=1e-5, atol=1e-5)

    print("KERNEL_OK")
</pallas_src>

<mosaic_0001>
module attributes {stable_mosaic.version = 11 : i64} {
  func.func @rnn_kernel(%arg0: memref<64x1xi32, #tpu.memory_space<vmem>>, %arg1: memref<128x32xf32, #tpu.memory_space<vmem>>, %arg2: memref<32x32xf32, #tpu.memory_space<vmem>>, %arg3: memref<32x128xf32, #tpu.memory_space<vmem>>, %arg4: memref<1x128xf32, #tpu.memory_space<vmem>>, %arg5: memref<8x128xf32, #tpu.memory_space<vmem>>) attributes {dimension_semantics = [], scalar_prefetch = 0 : i64, scratch_operands = 0 : i64, tpu.core_type = #tpu.core_type<tc>} {
    %c0 = arith.constant 0 : index
    %c0_0 = arith.constant 0 : index
    %0 = vector.load %arg0[%c0, %c0_0] : memref<64x1xi32, #tpu.memory_space<vmem>>, vector<64x1xi32>
    %1 = tpu.iota {dimensions = array<i32: 1>} : vector<64x128xi32>
    %2 = vector.broadcast %0 : vector<64x1xi32> to vector<64x128xi32>
    %3 = arith.cmpi eq, %1, %2 : vector<64x128xi32>
    %cst = arith.constant 1.000000e+00 : f32
    %cst_1 = arith.constant 0.000000e+00 : f32
    %4 = vector.broadcast %cst : f32 to vector<64x128xf32>
    %5 = vector.broadcast %cst_1 : f32 to vector<64x128xf32>
    %6 = arith.select %3, %4, %5 : vector<64x128xi1>, vector<64x128xf32>
    %c0_2 = arith.constant 0 : index
    %c0_3 = arith.constant 0 : index
    %7 = vector.load %arg1[%c0_2, %c0_3] : memref<128x32xf32, #tpu.memory_space<vmem>>, vector<128x32xf32>
    %cst_4 = arith.constant dense<0.000000e+00> : vector<64x32xf32>
    %8 = tpu.matmul %6, %7, %cst_4 {dimension_numbers = #tpu.dot_dimension_numbers<[1], [0], [0], [1], [0, 0, 1, 1], [], []>} : vector<64x128xf32>, vector<128x32xf32>, vector<64x32xf32> -> vector<64x32xf32>
    %c0_5 = arith.constant 0 : index
    %c0_6 = arith.constant 0 : index
    %9 = vector.load %arg2[%c0_5, %c0_6] : memref<32x32xf32, #tpu.memory_space<vmem>>, vector<32x32xf32>
    %cst_7 = arith.constant 0.000000e+00 : f32
    %10 = vector.broadcast %cst_7 : f32 to vector<8x32xf32>
    %11 = vector.extract_strided_slice %8 {offsets = [0, 0], sizes = [8, 32], strides = [1, 1]} : vector<64x32xf32> to vector<8x32xf32>
    %cst_8 = arith.constant dense<0.000000e+00> : vector<8x32xf32>
    %12 = tpu.matmul %10, %9, %cst_8 {dimension_numbers = #tpu.dot_dimension_numbers<[1], [0], [0], [1], [0, 0, 1, 1], [], []>} : vector<8x32xf32>, vector<32x32xf32>, vector<8x32xf32> -> vector<8x32xf32>
    %13 = arith.addf %11, %12 : vector<8x32xf32>
    %14 = math.tanh %13 : vector<8x32xf32>
    %15 = vector.extract_strided_slice %8 {offsets = [8, 0], sizes = [8, 32], strides = [1, 1]} : vector<64x32xf32> to vector<8x32xf32>
    %cst_9 = arith.constant dense<0.000000e+00> : vector<8x32xf32>
    %16 = tpu.matmul %14, %9, %cst_9 {dimension_numbers = #tpu.dot_dimension_numbers<[1], [0], [0], [1], [0, 0, 1, 1], [], []>} : vector<8x32xf32>, vector<32x32xf32>, vector<8x32xf32> -> vector<8x32xf32>
    %17 = arith.addf %15, %16 : vector<8x32xf32>
    %18 = math.tanh %17 : vector<8x32xf32>
    %19 = vector.extract_strided_slice %8 {offsets = [16, 0], sizes = [8, 32], strides = [1, 1]} : vector<64x32xf32> to vector<8x32xf32>
    %cst_10 = arith.constant dense<0.000000e+00> : vector<8x32xf32>
    %20 = tpu.matmul %18, %9, %cst_10 {dimension_numbers = #tpu.dot_dimension_numbers<[1], [0], [0], [1], [0, 0, 1, 1], [], []>} : vector<8x32xf32>, vector<32x32xf32>, vector<8x32xf32> -> vector<8x32xf32>
    %21 = arith.addf %19, %20 : vector<8x32xf32>
    %22 = math.tanh %21 : vector<8x32xf32>
    %23 = vector.extract_strided_slice %8 {offsets = [24, 0], sizes = [8, 32], strides = [1, 1]} : vector<64x32xf32> to vector<8x32xf32>
    %cst_11 = arith.constant dense<0.000000e+00> : vector<8x32xf32>
    %24 = tpu.matmul %22, %9, %cst_11 {dimension_numbers = #tpu.dot_dimension_numbers<[1], [0], [0], [1], [0, 0, 1, 1], [], []>} : vector<8x32xf32>, vector<32x32xf32>, vector<8x32xf32> -> vector<8x32xf32>
    %25 = arith.addf %23, %24 : vector<8x32xf32>
    %26 = math.tanh %25 : vector<8x32xf32>
    %27 = vector.extract_strided_slice %8 {offsets = [32, 0], sizes = [8, 32], strides = [1, 1]} : vector<64x32xf32> to vector<8x32xf32>
    %cst_12 = arith.constant dense<0.000000e+00> : vector<8x32xf32>
    %28 = tpu.matmul %26, %9, %cst_12 {dimension_numbers = #tpu.dot_dimension_numbers<[1], [0], [0], [1], [0, 0, 1, 1], [], []>} : vector<8x32xf32>, vector<32x32xf32>, vector<8x32xf32> -> vector<8x32xf32>
    %29 = arith.addf %27, %28 : vector<8x32xf32>
    %30 = math.tanh %29 : vector<8x32xf32>
    %31 = vector.extract_strided_slice %8 {offsets = [40, 0], sizes = [8, 32], strides = [1, 1]} : vector<64x32xf32> to vector<8x32xf32>
    %cst_13 = arith.constant dense<0.000000e+00> : vector<8x32xf32>
    %32 = tpu.matmul %30, %9, %cst_13 {dimension_numbers = #tpu.dot_dimension_numbers<[1], [0], [0], [1], [0, 0, 1, 1], [], []>} : vector<8x32xf32>, vector<32x32xf32>, vector<8x32xf32> -> vector<8x32xf32>
    %33 = arith.addf %31, %32 : vector<8x32xf32>
    %34 = math.tanh %33 : vector<8x32xf32>
    %35 = vector.extract_strided_slice %8 {offsets = [48, 0], sizes = [8, 32], strides = [1, 1]} : vector<64x32xf32> to vector<8x32xf32>
    %cst_14 = arith.constant dense<0.000000e+00> : vector<8x32xf32>
    %36 = tpu.matmul %34, %9, %cst_14 {dimension_numbers = #tpu.dot_dimension_numbers<[1], [0], [0], [1], [0, 0, 1, 1], [], []>} : vector<8x32xf32>, vector<32x32xf32>, vector<8x32xf32> -> vector<8x32xf32>
    %37 = arith.addf %35, %36 : vector<8x32xf32>
    %38 = math.tanh %37 : vector<8x32xf32>
    %39 = vector.extract_strided_slice %8 {offsets = [56, 0], sizes = [8, 32], strides = [1, 1]} : vector<64x32xf32> to vector<8x32xf32>
    %cst_15 = arith.constant dense<0.000000e+00> : vector<8x32xf32>
    %40 = tpu.matmul %38, %9, %cst_15 {dimension_numbers = #tpu.dot_dimension_numbers<[1], [0], [0], [1], [0, 0, 1, 1], [], []>} : vector<8x32xf32>, vector<32x32xf32>, vector<8x32xf32> -> vector<8x32xf32>
    %41 = arith.addf %39, %40 : vector<8x32xf32>
    %42 = math.tanh %41 : vector<8x32xf32>
    %c0_16 = arith.constant 0 : index
    %c0_17 = arith.constant 0 : index
    %43 = vector.load %arg3[%c0_16, %c0_17] : memref<32x128xf32, #tpu.memory_space<vmem>>, vector<32x128xf32>
    %cst_18 = arith.constant dense<0.000000e+00> : vector<8x128xf32>
    %44 = tpu.matmul %42, %43, %cst_18 {dimension_numbers = #tpu.dot_dimension_numbers<[1], [0], [0], [1], [0, 0, 1, 1], [], []>} : vector<8x32xf32>, vector<32x128xf32>, vector<8x128xf32> -> vector<8x128xf32>
    %c0_19 = arith.constant 0 : index
    %c0_20 = arith.constant 0 : index
    %45 = vector.load %arg4[%c0_19, %c0_20] : memref<1x128xf32, #tpu.memory_space<vmem>>, vector<1x128xf32>
    %46 = vector.broadcast %45 : vector<1x128xf32> to vector<8x128xf32>
    %47 = arith.addf %44, %46 : vector<8x128xf32>
    %c0_21 = arith.constant 0 : index
    %c0_22 = arith.constant 0 : index
    %48 = vector.load %arg5[%c0_21, %c0_22] : memref<8x128xf32, #tpu.memory_space<vmem>>, vector<8x128xf32>
    tpu.vector_store %arg5[%c0_21, %c0_22], %47 {strides = array<i32>} : memref<8x128xf32, #tpu.memory_space<vmem>>, vector<8x128xf32>,
    return
  }
}

</mosaic_0001>

<llo_original>
// kernel: rnn_forward.1
$region0: #{rnn_forward.1}
  #allocation0 [shape = 'u32[]', space=smem, size = 0x4, offset = 0x4, fixed_abs, tag = 'smem constant byte address 0x4 - core index']
  #allocation1 [shape = 'u32[144,128]{1,0:T(1,128)}', space=vmem, size = 0x12000, scoped, tag = 'internal scratch']
  %s0 = inlined_call_operand.vmem [shape: s32[64,1], index: 0, kind: input, shape index: {}]
  %s1 = inlined_call_operand.vmem [shape: f32[128,32], index: 1, kind: input, shape index: {}]
  %s2 = inlined_call_operand.vmem [shape: f32[32,32], index: 2, kind: input, shape index: {}]
  %s3 = inlined_call_operand.vmem [shape: f32[32,128], index: 3, kind: input, shape index: {}]
  %s4 = inlined_call_operand.vmem [shape: f32[1,128], index: 4, kind: input, shape index: {}]
  %s5 = inlined_call_operand.vmem [shape: f32[8,128], index: 5, kind: output, shape index: {}]
  %s6 = sld [smem:[#allocation0]]
  $region30: #{rnn_forward.1} parent=0
    _
  %s8 = ssub.s32 1, %s6
  %s9 = scalar_select 0, %s8, %s6
  // Predicated region
  $region2: #{rnn_forward.1} parent=0 // pred_check
    _
  $region3: #{rnn_forward.1} parent=0 // pred_check_branch
    %11 = sbr.rel (0) target = $region5
  $region4: #{rnn_forward.1} parent=0 // pred_region
    _
  $region5: #{rnn_forward.1} parent=0 // pred_fallthru
    _
  // Predicated region
  $region6: #{rnn_forward.1} parent=0 // pred_check
    _
  $region7: #{rnn_forward.1} parent=0 // pred_check_branch
    %13 = sbr.rel (0) target = $region9
  $region8: #{rnn_forward.1} parent=0 // pred_region
    _
  $region9: #{rnn_forward.1} parent=0 // pred_fallthru
    _
  // Predicated region
  $region10: #{rnn_forward.1} parent=0 // pred_check
    _
  $region11: #{rnn_forward.1} parent=0 // pred_check_branch
    %15 = sbr.rel (0) target = $region13
  $region12: #{rnn_forward.1} parent=0 // pred_region
    _
  $region13: #{rnn_forward.1} parent=0 // pred_fallthru
    _
  // Predicated region
  $region14: #{rnn_forward.1} parent=0 // pred_check
    _
  $region15: #{rnn_forward.1} parent=0 // pred_check_branch
    %17 = sbr.rel (0) target = $region17
  $region16: #{rnn_forward.1} parent=0 // pred_region
    _
  $region17: #{rnn_forward.1} parent=0 // pred_fallthru
    _
  // Predicated region
  $region18: #{rnn_forward.1} parent=0 // pred_check
    _
  $region19: #{rnn_forward.1} parent=0 // pred_check_branch
    %19 = sbr.rel (0) target = $region21
  $region20: #{rnn_forward.1} parent=0 // pred_region
    _
  $region21: #{rnn_forward.1} parent=0 // pred_fallthru
    _
  %v20 = vld [vmem:[%s0] sm:$0xff]
  %v21 = vld [vmem:[%s0 + $0x8] sm:$0xff]
  %v22 = vld [vmem:[%s0 + $0x10] sm:$0xff]
  %v23 = vld [vmem:[%s0 + $0x18] sm:$0xff]
  %v24 = vld [vmem:[%s0 + $0x20] sm:$0xff]
  %v25 = vld [vmem:[%s0 + $0x28] sm:$0xff]
  %v26 = vld [vmem:[%s0 + $0x30] sm:$0xff]
  %v27 = vld [vmem:[%s0 + $0x38] sm:$0xff]
  %v28 = vlaneseq
  %v29 = vand.u32 %v28, 127
  %30 = vset.pattern.permute.xlu0 0
  %31 = vperm.xlu0 %30, %v20
  %v32 = vpop.permute.xlu0 %31
  %33 = vset.pattern.permute.xlu0 0
  %34 = vperm.xlu0 %33, %v21
  %v35 = vpop.permute.xlu0 %34
  %36 = vset.pattern.permute.xlu0 0
  %37 = vperm.xlu0 %36, %v22
  %v38 = vpop.permute.xlu0 %37
  %39 = vset.pattern.permute.xlu0 0
  %40 = vperm.xlu0 %39, %v23
  %v41 = vpop.permute.xlu0 %40
  %42 = vset.pattern.permute.xlu0 0
  %43 = vperm.xlu0 %42, %v24
  %v44 = vpop.permute.xlu0 %43
  %45 = vset.pattern.permute.xlu0 0
  %46 = vperm.xlu0 %45, %v25
  %v47 = vpop.permute.xlu0 %46
  %48 = vset.pattern.permute.xlu0 0
  %49 = vperm.xlu0 %48, %v26
  %v50 = vpop.permute.xlu0 %49
  %51 = vset.pattern.permute.xlu0 0
  %52 = vperm.xlu0 %51, %v27
  %v53 = vpop.permute.xlu0 %52
  %vm54 = vcmp.eq.s32.totalorder %v29, %v32
  %vm55 = vcmp.eq.s32.totalorder %v29, %v35
  %vm56 = vcmp.eq.s32.totalorder %v29, %v38
  %vm57 = vcmp.eq.s32.totalorder %v29, %v41
  %vm58 = vcmp.eq.s32.totalorder %v29, %v44
  %vm59 = vcmp.eq.s32.totalorder %v29, %v47
  %vm60 = vcmp.eq.s32.totalorder %v29, %v50
  %vm61 = vcmp.eq.s32.totalorder %v29, %v53
  %v62 = vsel %vm54, 1.0, 0.0
  %v63 = vsel %vm55, 1.0, 0.0
  %v64 = vsel %vm56, 1.0, 0.0
  %v65 = vsel %vm57, 1.0, 0.0
  %v66 = vsel %vm58, 1.0, 0.0
  %v67 = vsel %vm59, 1.0, 0.0
  %v68 = vsel %vm60, 1.0, 0.0
  %v69 = vsel %vm61, 1.0, 0.0
  %v70 = vld [vmem:[%s1] sm:$0xff]
  %v71 = vld [vmem:[%s1 + $0x8] sm:$0xff]
  %v72 = vld [vmem:[%s1 + $0x10] sm:$0xff]
  %v73 = vld [vmem:[%s1 + $0x18] sm:$0xff]
  %v74 = vld [vmem:[%s1 + $0x20] sm:$0xff]
  %v75 = vld [vmem:[%s1 + $0x28] sm:$0xff]
  %v76 = vld [vmem:[%s1 + $0x30] sm:$0xff]
  %v77 = vld [vmem:[%s1 + $0x38] sm:$0xff]
  %v78 = vld [vmem:[%s1 + $0x40] sm:$0xff]
  %v79 = vld [vmem:[%s1 + $0x48] sm:$0xff]
  %v80 = vld [vmem:[%s1 + $0x50] sm:$0xff]
  %v81 = vld [vmem:[%s1 + $0x58] sm:$0xff]
  %v82 = vld [vmem:[%s1 + $0x60] sm:$0xff]
  %v83 = vld [vmem:[%s1 + $0x68] sm:$0xff]
  %v84 = vld [vmem:[%s1 + $0x70] sm:$0xff]
  %v85 = vld [vmem:[%s1 + $0x78] sm:$0xff]
  %86 = vmatprep.subr.mxu0 0.0
  %87 = vmatpush1.msra.mxu0 %v70
  %88 = vmatprep.subr.mxu0 0.0
  %89 = vmatpush1.msra.mxu0 %v71
  %90 = vmatprep.subr.mxu0 0.0
  %91 = vmatpush1.msra.mxu0 %v72
  %92 = vmatprep.subr.mxu0 0.0
  %93 = vmatpush1.msra.mxu0 %v73
  %94 = vmatprep.subr.mxu0 0.0
  %95 = vmatpush1.msra.mxu0 %v74
  %96 = vmatprep.subr.mxu0 0.0
  %97 = vmatpush1.msra.mxu0 %v75
  %98 = vmatprep.subr.mxu0 0.0
  %99 = vmatpush1.msra.mxu0 %v76
  %100 = vmatprep.subr.mxu0 0.0
  %101 = vmatpush1.msra.mxu0 %v77
  %102 = vmatprep.subr.mxu0 0.0
  %103 = vmatpush1.msra.mxu0 %v78
  %104 = vmatprep.subr.mxu0 0.0
  %105 = vmatpush1.msra.mxu0 %v79
  %106 = vmatprep.subr.mxu0 0.0
  %107 = vmatpush1.msra.mxu0 %v80
  %108 = vmatprep.subr.mxu0 0.0
  %109 = vmatpush1.msra.mxu0 %v81
  %110 = vmatprep.subr.mxu0 0.0
  %111 = vmatpush1.msra.mxu0 %v82
  %112 = vmatprep.subr.mxu0 0.0
  %113 = vmatpush1.msra.mxu0 %v83
  %114 = vmatprep.subr.mxu0 0.0
  %115 = vmatpush1.msra.mxu0 %v84
  %116 = vmatprep.subr.mxu0 0.0
  %117 = vmatpush1.msra.mxu0 %v85
  %118 = vmatprep.subr.mxu0 0.0
  %119 = vmatpush1.msra.mxu0 0.0
  %120 = vmatprep.subr.mxu0 0.0
  %121 = vmatpush1.msra.mxu0 0.0
  %122 = vmatprep.subr.mxu0 0.0
  %123 = vmatpush1.msra.mxu0 0.0
  %124 = vmatprep.subr.mxu0 0.0
  %125 = vmatpush1.msra.mxu0 0.0
  %126 = vmatprep.subr.mxu0 0.0
  %127 = vmatpush1.msra.mxu0 0.0
  %128 = vmatprep.subr.mxu0 0.0
  %129 = vmatpush1.msra.mxu0 0.0
  %130 = vmatprep.subr.mxu0 0.0
  %131 = vmatpush1.msra.mxu0 0.0
  %132 = vmatprep.subr.mxu0 0.0
  %133 = vmatpush1.msra.mxu0 0.0
  %134 = vmatprep.subr.mxu0 0.0
  %135 = vmatpush1.msra.mxu0 0.0
  %136 = vmatprep.subr.mxu0 0.0
  %137 = vmatpush1.msra.mxu0 0.0
  %138 = vmatprep.subr.mxu0 0.0
  %139 = vmatpush1.msra.mxu0 0.0
  %140 = vmatprep.subr.mxu0 0.0
  %141 = vmatpush1.msra.mxu0 0.0
  %142 = vmatprep.subr.mxu0 0.0
  %143 = vmatpush1.msra.mxu0 0.0
  %144 = vmatprep.subr.mxu0 0.0
  %145 = vmatpush1.msra.mxu0 0.0
  %146 = vmatprep.subr.mxu0 0.0
  %147 = vmatpush1.msra.mxu0 0.0
  %148 = vmatprep.subr.mxu0 0.0
  %149 = vmatpush1.msra.mxu0 0.0
  %150 = vmatprep.mubr.f32.mxu0 0.0
  %151 = vmatmul.mubr.f32.gmra.mrb[0].mxu0 %v62
  %v152 = vpop.f32.mrb[0].mxu0
  %v153 = vadd.f32 0.0, %v152
  %v154 = vpop.f32.mrb[0].mxu0
  %155 = vmatprep.mubr.f32.mxu0 0.0
  %156 = vmatmul.mubr.f32.gmra.mrb[0].mxu0 %v63
  %v157 = vpop.f32.mrb[0].mxu0
  %v158 = vadd.f32 0.0, %v157
  %v159 = vpop.f32.mrb[0].mxu0
  %160 = vmatprep.mubr.f32.mxu0 0.0
  %161 = vmatmul.mubr.f32.gmra.mrb[0].mxu0 %v64
  %v162 = vpop.f32.mrb[0].mxu0
  %v163 = vadd.f32 0.0, %v162
  %v164 = vpop.f32.mrb[0].mxu0
  %165 = vmatprep.mubr.f32.mxu0 0.0
  %166 = vmatmul.mubr.f32.gmra.mrb[0].mxu0 %v65
  %v167 = vpop.f32.mrb[0].mxu0
  %v168 = vadd.f32 0.0, %v167
  %v169 = vpop.f32.mrb[0].mxu0
  %170 = vmatprep.mubr.f32.mxu0 0.0
  %171 = vmatmul.mubr.f32.gmra.mrb[0].mxu0 %v66
  %v172 = vpop.f32.mrb[0].mxu0
  %v173 = vadd.f32 0.0, %v172
  %v174 = vpop.f32.mrb[0].mxu0
  %175 = vmatprep.mubr.f32.mxu0 0.0
  %176 = vmatmul.mubr.f32.gmra.mrb[0].mxu0 %v67
  %v177 = vpop.f32.mrb[0].mxu0
  %v178 = vadd.f32 0.0, %v177
  %v179 = vpop.f32.mrb[0].mxu0
  %180 = vmatprep.mubr.f32.mxu0 0.0
  %181 = vmatmul.mubr.f32.gmra.mrb[0].mxu0 %v68
  %v182 = vpop.f32.mrb[0].mxu0
  %v183 = vadd.f32 0.0, %v182
  %v184 = vpop.f32.mrb[0].mxu0
  %185 = vmatprep.mubr.f32.mxu0 0.0
  %186 = vmatmul.mubr.f32.gmra.mrb[0].mxu0 %v69
  %v187 = vpop.f32.mrb[0].mxu0
  %v188 = vadd.f32 0.0, %v187
  %v189 = vpop.f32.mrb[0].mxu0
  %190 = vdwg.mxu0
  %v191 = vld [vmem:[%s2] sm:$0xff]
  %v192 = vld [vmem:[%s2 + $0x8] sm:$0xff]
  %v193 = vld [vmem:[%s2 + $0x10] sm:$0xff]
  %v194 = vld [vmem:[%s2 + $0x18] sm:$0xff]
  %vm195 = vcmask 261120
  %v197 = vsel %vm195, 0.0, 0
  %199 = vmatprep.subr.mxu0 0.0
  %200 = vmatpush1.msra.mxu0 %v191
  %201 = vmatprep.subr.mxu0 0.0
  %202 = vmatpush1.msra.mxu0 %v192
  %203 = vmatprep.subr.mxu0 0.0
  %204 = vmatpush1.msra.mxu0 %v193
  %205 = vmatprep.subr.mxu0 0.0
  %206 = vmatpush1.msra.mxu0 %v194
  %207 = vmatprep.subr.mxu0 0.0
  %208 = vmatpush1.msra.mxu0 0.0
  %209 = vmatprep.subr.mxu0 0.0
  %210 = vmatpush1.msra.mxu0 0.0
  %211 = vmatprep.subr.mxu0 0.0
  %212 = vmatpush1.msra.mxu0 0.0
  %213 = vmatprep.subr.mxu0 0.0
  %214 = vmatpush1.msra.mxu0 0.0
  %215 = vmatprep.subr.mxu0 0.0
  %216 = vmatpush1.msra.mxu0 0.0
  %217 = vmatprep.subr.mxu0 0.0
  %218 = vmatpush1.msra.mxu0 0.0
  %219 = vmatprep.subr.mxu0 0.0
  %220 = vmatpush1.msra.mxu0 0.0
  %221 = vmatprep.subr.mxu0 0.0
  %222 = vmatpush1.msra.mxu0 0.0
  %223 = vmatprep.subr.mxu0 0.0
  %224 = vmatpush1.msra.mxu0 0.0
  %225 = vmatprep.subr.mxu0 0.0
  %226 = vmatpush1.msra.mxu0 0.0
  %227 = vmatprep.subr.mxu0 0.0
  %228 = vmatpush1.msra.mxu0 0.0
  %229 = vmatprep.subr.mxu0 0.0
  %230 = vmatpush1.msra.mxu0 0.0
  %231 = vmatprep.subr.mxu0 0.0
  %232 = vmatpush1.msra.mxu0 0.0
  %233 = vmatprep.subr.mxu0 0.0
  %234 = vmatpush1.msra.mxu0 0.0
  %235 = vmatprep.subr.mxu0 0.0
  %236 = vmatpush1.msra.mxu0 0.0
  %237 = vmatprep.subr.mxu0 0.0
  %238 = vmatpush1.msra.mxu0 0.0
  %239 = vmatprep.subr.mxu0 0.0
  %240 = vmatpush1.msra.mxu0 0.0
  %241 = vmatprep.subr.mxu0 0.0
  %242 = vmatpush1.msra.mxu0 0.0
  %243 = vmatprep.subr.mxu0 0.0
  %244 = vmatpush1.msra.mxu0 0.0
  %245 = vmatprep.subr.mxu0 0.0
  %246 = vmatpush1.msra.mxu0 0.0
  %247 = vmatprep.subr.mxu0 0.0
  %248 = vmatpush1.msra.mxu0 0.0
  %249 = vmatprep.subr.mxu0 0.0
  %250 = vmatpush1.msra.mxu0 0.0
  %251 = vmatprep.subr.mxu0 0.0
  %252 = vmatpush1.msra.mxu0 0.0
  %253 = vmatprep.subr.mxu0 0.0
  %254 = vmatpush1.msra.mxu0 0.0
  %255 = vmatprep.subr.mxu0 0.0
  %256 = vmatpush1.msra.mxu0 0.0
  %257 = vmatprep.subr.mxu0 0.0
  %258 = vmatpush1.msra.mxu0 0.0
  %259 = vmatprep.subr.mxu0 0.0
  %260 = vmatpush1.msra.mxu0 0.0
  %261 = vmatprep.subr.mxu0 0.0
  %262 = vmatpush1.msra.mxu0 0.0
  %263 = vmatprep.mubr.f32.mxu0 0.0
  %264 = vmatmul.mubr.f32.gmra.mrb[0].mxu0 %v197
  %v265 = vpop.f32.mrb[0].mxu0
  %v266 = vadd.f32 0.0, %v265
  %v267 = vpop.f32.mrb[0].mxu0
  %268 = vdwg.mxu0
  %v269 = vadd.f32 %v153, %v266
  %v270 = vtanh.pop %v269
  %v272 = vsel %vm195, %v270, 0
  %274 = vmatprep.subr.mxu0 0.0
  %275 = vmatpush1.msra.mxu0 %v191
  %276 = vmatprep.subr.mxu0 0.0
  %277 = vmatpush1.msra.mxu0 %v192
  %278 = vmatprep.subr.mxu0 0.0
  %279 = vmatpush1.msra.mxu0 %v193
  %280 = vmatprep.subr.mxu0 0.0
  %281 = vmatpush1.msra.mxu0 %v194
  %282 = vmatprep.subr.mxu0 0.0
  %283 = vmatpush1.msra.mxu0 0.0
  %284 = vmatprep.subr.mxu0 0.0
  %285 = vmatpush1.msra.mxu0 0.0
  %286 = vmatprep.subr.mxu0 0.0
  %287 = vmatpush1.msra.mxu0 0.0
  %288 = vmatprep.subr.mxu0 0.0
  %289 = vmatpush1.msra.mxu0 0.0
  %290 = vmatprep.subr.mxu0 0.0
  %291 = vmatpush1.msra.mxu0 0.0
  %292 = vmatprep.subr.mxu0 0.0
  %293 = vmatpush1.msra.mxu0 0.0
  %294 = vmatprep.subr.mxu0 0.0
  %295 = vmatpush1.msra.mxu0 0.0
  %296 = vmatprep.subr.mxu0 0.0
  %297 = vmatpush1.msra.mxu0 0.0
  %298 = vmatprep.subr.mxu0 0.0
  %299 = vmatpush1.msra.mxu0 0.0
  %300 = vmatprep.subr.mxu0 0.0
  %301 = vmatpush1.msra.mxu0 0.0
  %302 = vmatprep.subr.mxu0 0.0
  %303 = vmatpush1.msra.mxu0 0.0
  %304 = vmatprep.subr.mxu0 0.0
  %305 = vmatpush1.msra.mxu0 0.0
  %306 = vmatprep.subr.mxu0 0.0
  %307 = vmatpush1.msra.mxu0 0.0
  %308 = vmatprep.subr.mxu0 0.0
  %309 = vmatpush1.msra.mxu0 0.0
  %310 = vmatprep.subr.mxu0 0.0
  %311 = vmatpush1.msra.mxu0 0.0
  %312 = vmatprep.subr.mxu0 0.0
  %313 = vmatpush1.msra.mxu0 0.0
  %314 = vmatprep.subr.mxu0 0.0
  %315 = vmatpush1.msra.mxu0 0.0
  %316 = vmatprep.subr.mxu0 0.0
  %317 = vmatpush1.msra.mxu0 0.0
  %318 = vmatprep.subr.mxu0 0.0
  %319 = vmatpush1.msra.mxu0 0.0
  %320 = vmatprep.subr.mxu0 0.0
  %321 = vmatpush1.msra.mxu0 0.0
  %322 = vmatprep.subr.mxu0 0.0
  %323 = vmatpush1.msra.mxu0 0.0
  %324 = vmatprep.subr.mxu0 0.0
  %325 = vmatpush1.msra.mxu0 0.0
  %326 = vmatprep.subr.mxu0 0.0
  %327 = vmatpush1.msra.mxu0 0.0
  %328 = vmatprep.subr.mxu0 0.0
  %329 = vmatpush1.msra.mxu0 0.0
  %330 = vmatprep.subr.mxu0 0.0
  %331 = vmatpush1.msra.mxu0 0.0
  %332 = vmatprep.subr.mxu0 0.0
  %333 = vmatpush1.msra.mxu0 0.0
  %334 = vmatprep.subr.mxu0 0.0
  %335 = vmatpush1.msra.mxu0 0.0
  %336 = vmatprep.subr.mxu0 0.0
  %337 = vmatpush1.msra.mxu0 0.0
  %338 = vmatprep.mubr.f32.mxu0 0.0
  %339 = vmatmul.mubr.f32.gmra.mrb[0].mxu0 %v272
  %v340 = vpop.f32.mrb[0].mxu0
  %v341 = vadd.f32 0.0, %v340
  %v342 = vpop.f32.mrb[0].mxu0
  %343 = vdwg.mxu0
  %v344 = vadd.f32 %v158, %v341
  %v345 = vtanh.pop %v344
  %v347 = vsel %vm195, %v345, 0
  %349 = vmatprep.subr.mxu0 0.0
  %350 = vmatpush1.msra.mxu0 %v191
  %351 = vmatprep.subr.mxu0 0.0
  %352 = vmatpush1.msra.mxu0 %v192
  %353 = vmatprep.subr.mxu0 0.0
  %354 = vmatpush1.msra.mxu0 %v193
  %355 = vmatprep.subr.mxu0 0.0
  %356 = vmatpush1.msra.mxu0 %v194
  %357 = vmatprep.subr.mxu0 0.0
  %358 = vmatpush1.msra.mxu0 0.0
  %359 = vmatprep.subr.mxu0 0.0
  %360 = vmatpush1.msra.mxu0 0.0
  %361 = vmatprep.subr.mxu0 0.0
  %362 = vmatpush1.msra.mxu0 0.0
  %363 = vmatprep.subr.mxu0 0.0
  %364 = vmatpush1.msra.mxu0 0.0
  %365 = vmatprep.subr.mxu0 0.0
  %366 = vmatpush1.msra.mxu0 0.0
  %367 = vmatprep.subr.mxu0 0.0
  %368 = vmatpush1.msra.mxu0 0.0
  %369 = vmatprep.subr.mxu0 0.0
  %370 = vmatpush1.msra.mxu0 0.0
  %371 = vmatprep.subr.mxu0 0.0
  %372 = vmatpush1.msra.mxu0 0.0
  %373 = vmatprep.subr.mxu0 0.0
  %374 = vmatpush1.msra.mxu0 0.0
  %375 = vmatprep.subr.mxu0 0.0
  %376 = vmatpush1.msra.mxu0 0.0
  %377 = vmatprep.subr.mxu0 0.0
  %378 = vmatpush1.msra.mxu0 0.0
  %379 = vmatprep.subr.mxu0 0.0
  %380 = vmatpush1.msra.mxu0 0.0
  %381 = vmatprep.subr.mxu0 0.0
  %382 = vmatpush1.msra.mxu0 0.0
  %383 = vmatprep.subr.mxu0 0.0
  %384 = vmatpush1.msra.mxu0 0.0
  %385 = vmatprep.subr.mxu0 0.0
  %386 = vmatpush1.msra.mxu0 0.0
  %387 = vmatprep.subr.mxu0 0.0
  %388 = vmatpush1.msra.mxu0 0.0
  %389 = vmatprep.subr.mxu0 0.0
  %390 = vmatpush1.msra.mxu0 0.0
  %391 = vmatprep.subr.mxu0 0.0
  %392 = vmatpush1.msra.mxu0 0.0
  %393 = vmatprep.subr.mxu0 0.0
  %394 = vmatpush1.msra.mxu0 0.0
  %395 = vmatprep.subr.mxu0 0.0
  %396 = vmatpush1.msra.mxu0 0.0
  %397 = vmatprep.subr.mxu0 0.0
  %398 = vmatpush1.msra.mxu0 0.0
  %399 = vmatprep.subr.mxu0 0.0
  %400 = vmatpush1.msra.mxu0 0.0
  %401 = vmatprep.subr.mxu0 0.0
  %402 = vmatpush1.msra.mxu0 0.0
  %403 = vmatprep.subr.mxu0 0.0
  %404 = vmatpush1.msra.mxu0 0.0
  %405 = vmatprep.subr.mxu0 0.0
  %406 = vmatpush1.msra.mxu0 0.0
  %407 = vmatprep.subr.mxu0 0.0
  %408 = vmatpush1.msra.mxu0 0.0
  %409 = vmatprep.subr.mxu0 0.0
  %410 = vmatpush1.msra.mxu0 0.0
  %411 = vmatprep.subr.mxu0 0.0
  %412 = vmatpush1.msra.mxu0 0.0
  %413 = vmatprep.mubr.f32.mxu0 0.0
  %414 = vmatmul.mubr.f32.gmra.mrb[0].mxu0 %v347
  %v415 = vpop.f32.mrb[0].mxu0
  %v416 = vadd.f32 0.0, %v415
  %v417 = vpop.f32.mrb[0].mxu0
  %418 = vdwg.mxu0
  %v419 = vadd.f32 %v163, %v416
  %v420 = vtanh.pop %v419
  %v422 = vsel %vm195, %v420, 0
  %424 = vmatprep.subr.mxu0 0.0
  %425 = vmatpush1.msra.mxu0 %v191
  %426 = vmatprep.subr.mxu0 0.0
  %427 = vmatpush1.msra.mxu0 %v192
  %428 = vmatprep.subr.mxu0 0.0
  %429 = vmatpush1.msra.mxu0 %v193
  %430 = vmatprep.subr.mxu0 0.0
  %431 = vmatpush1.msra.mxu0 %v194
  %432 = vmatprep.subr.mxu0 0.0
  %433 = vmatpush1.msra.mxu0 0.0
  %434 = vmatprep.subr.mxu0 0.0
  %435 = vmatpush1.msra.mxu0 0.0
  %436 = vmatprep.subr.mxu0 0.0
  %437 = vmatpush1.msra.mxu0 0.0
  %438 = vmatprep.subr.mxu0 0.0
  %439 = vmatpush1.msra.mxu0 0.0
  %440 = vmatprep.subr.mxu0 0.0
  %441 = vmatpush1.msra.mxu0 0.0
  %442 = vmatprep.subr.mxu0 0.0
  %443 = vmatpush1.msra.mxu0 0.0
  %444 = vmatprep.subr.mxu0 0.0
  %445 = vmatpush1.msra.mxu0 0.0
  %446 = vmatprep.subr.mxu0 0.0
  %447 = vmatpush1.msra.mxu0 0.0
  %448 = vmatprep.subr.mxu0 0.0
  %449 = vmatpush1.msra.mxu0 0.0
  %450 = vmatprep.subr.mxu0 0.0
  %451 = vmatpush1.msra.mxu0 0.0
  %452 = vmatprep.subr.mxu0 0.0
  %453 = vmatpush1.msra.mxu0 0.0
  %454 = vmatprep.subr.mxu0 0.0
  %455 = vmatpush1.msra.mxu0 0.0
  %456 = vmatprep.subr.mxu0 0.0
  %457 = vmatpush1.msra.mxu0 0.0
  %458 = vmatprep.subr.mxu0 0.0
  %459 = vmatpush1.msra.mxu0 0.0
  %460 = vmatprep.subr.mxu0 0.0
  %461 = vmatpush1.msra.mxu0 0.0
  %462 = vmatprep.subr.mxu0 0.0
  %463 = vmatpush1.msra.mxu0 0.0
  %464 = vmatprep.subr.mxu0 0.0
  %465 = vmatpush1.msra.mxu0 0.0
  %466 = vmatprep.subr.mxu0 0.0
  %467 = vmatpush1.msra.mxu0 0.0
  %468 = vmatprep.subr.mxu0 0.0
  %469 = vmatpush1.msra.mxu0 0.0
  %470 = vmatprep.subr.mxu0 0.0
  %471 = vmatpush1.msra.mxu0 0.0
  %472 = vmatprep.subr.mxu0 0.0
  %473 = vmatpush1.msra.mxu0 0.0
  %474 = vmatprep.subr.mxu0 0.0
  %475 = vmatpush1.msra.mxu0 0.0
  %476 = vmatprep.subr.mxu0 0.0
  %477 = vmatpush1.msra.mxu0 0.0
  %478 = vmatprep.subr.mxu0 0.0
  %479 = vmatpush1.msra.mxu0 0.0
  %480 = vmatprep.subr.mxu0 0.0
  %481 = vmatpush1.msra.mxu0 0.0
  %482 = vmatprep.subr.mxu0 0.0
  %483 = vmatpush1.msra.mxu0 0.0
  %484 = vmatprep.subr.mxu0 0.0
  %485 = vmatpush1.msra.mxu0 0.0
  %486 = vmatprep.subr.mxu0 0.0
  %487 = vmatpush1.msra.mxu0 0.0
  %488 = vmatprep.mubr.f32.mxu0 0.0
  %489 = vmatmul.mubr.f32.gmra.mrb[0].mxu0 %v422
  %v490 = vpop.f32.mrb[0].mxu0
  %v491 = vadd.f32 0.0, %v490
  %v492 = vpop.f32.mrb[0].mxu0
  %493 = vdwg.mxu0
  %v494 = vadd.f32 %v168, %v491
  %v495 = vtanh.pop %v494
  %v497 = vsel %vm195, %v495, 0
  %499 = vmatprep.subr.mxu0 0.0
  %500 = vmatpush1.msra.mxu0 %v191
  %501 = vmatprep.subr.mxu0 0.0
  %502 = vmatpush1.msra.mxu0 %v192
  %503 = vmatprep.subr.mxu0 0.0
  %504 = vmatpush1.msra.mxu0 %v193
  %505 = vmatprep.subr.mxu0 0.0
  %506 = vmatpush1.msra.mxu0 %v194
  %507 = vmatprep.subr.mxu0 0.0
  %508 = vmatpush1.msra.mxu0 0.0
  %509 = vmatprep.subr.mxu0 0.0
  %510 = vmatpush1.msra.mxu0 0.0
  %511 = vmatprep.subr.mxu0 0.0
  %512 = vmatpush1.msra.mxu0 0.0
  %513 = vmatprep.subr.mxu0 0.0
  %514 = vmatpush1.msra.mxu0 0.0
  %515 = vmatprep.subr.mxu0 0.0
  %516 = vmatpush1.msra.mxu0 0.0
  %517 = vmatprep.subr.mxu0 0.0
  %518 = vmatpush1.msra.mxu0 0.0
  %519 = vmatprep.subr.mxu0 0.0
  %520 = vmatpush1.msra.mxu0 0.0
  %521 = vmatprep.subr.mxu0 0.0
  %522 = vmatpush1.msra.mxu0 0.0
  %523 = vmatprep.subr.mxu0 0.0
  %524 = vmatpush1.msra.mxu0 0.0
  %525 = vmatprep.subr.mxu0 0.0
  %526 = vmatpush1.msra.mxu0 0.0
  %527 = vmatprep.subr.mxu0 0.0
  %528 = vmatpush1.msra.mxu0 0.0
  %529 = vmatprep.subr.mxu0 0.0
  %530 = vmatpush1.msra.mxu0 0.0
  %531 = vmatprep.subr.mxu0 0.0
  %532 = vmatpush1.msra.mxu0 0.0
  %533 = vmatprep.subr.mxu0 0.0
  %534 = vmatpush1.msra.mxu0 0.0
  %535 = vmatprep.subr.mxu0 0.0
  %536 = vmatpush1.msra.mxu0 0.0
  %537 = vmatprep.subr.mxu0 0.0
  %538 = vmatpush1.msra.mxu0 0.0
  %539 = vmatprep.subr.mxu0 0.0
  %540 = vmatpush1.msra.mxu0 0.0
  %541 = vmatprep.subr.mxu0 0.0
  %542 = vmatpush1.msra.mxu0 0.0
  %543 = vmatprep.subr.mxu0 0.0
  %544 = vmatpush1.msra.mxu0 0.0
  %545 = vmatprep.subr.mxu0 0.0
  %546 = vmatpush1.msra.mxu0 0.0
  %547 = vmatprep.subr.mxu0 0.0
  %548 = vmatpush1.msra.mxu0 0.0
  %549 = vmatprep.subr.mxu0 0.0
  %550 = vmatpush1.msra.mxu0 0.0
  %551 = vmatprep.subr.mxu0 0.0
  %552 = vmatpush1.msra.mxu0 0.0
  %553 = vmatprep.subr.mxu0 0.0
  %554 = vmatpush1.msra.mxu0 0.0
  %555 = vmatprep.subr.mxu0 0.0
  %556 = vmatpush1.msra.mxu0 0.0
  %557 = vmatprep.subr.mxu0 0.0
  %558 = vmatpush1.msra.mxu0 0.0
  %559 = vmatprep.subr.mxu0 0.0
  %560 = vmatpush1.msra.mxu0 0.0
  %561 = vmatprep.subr.mxu0 0.0
  %562 = vmatpush1.msra.mxu0 0.0
  %563 = vmatprep.mubr.f32.mxu0 0.0
  %564 = vmatmul.mubr.f32.gmra.mrb[0].mxu0 %v497
  %v565 = vpop.f32.mrb[0].mxu0
  %v566 = vadd.f32 0.0, %v565
  %v567 = vpop.f32.mrb[0].mxu0
  %568 = vdwg.mxu0
  %v569 = vadd.f32 %v173, %v566
  %v570 = vtanh.pop %v569
  %v572 = vsel %vm195, %v570, 0
  %574 = vmatprep.subr.mxu0 0.0
  %575 = vmatpush1.msra.mxu0 %v191
  %576 = vmatprep.subr.mxu0 0.0
  %577 = vmatpush1.msra.mxu0 %v192
  %578 = vmatprep.subr.mxu0 0.0
  %579 = vmatpush1.msra.mxu0 %v193
  %580 = vmatprep.subr.mxu0 0.0
  %581 = vmatpush1.msra.mxu0 %v194
  %582 = vmatprep.subr.mxu0 0.0
  %583 = vmatpush1.msra.mxu0 0.0
  %584 = vmatprep.subr.mxu0 0.0
  %585 = vmatpush1.msra.mxu0 0.0
  %586 = vmatprep.subr.mxu0 0.0
  %587 = vmatpush1.msra.mxu0 0.0
  %588 = vmatprep.subr.mxu0 0.0
  %589 = vmatpush1.msra.mxu0 0.0
  %590 = vmatprep.subr.mxu0 0.0
  %591 = vmatpush1.msra.mxu0 0.0
  %592 = vmatprep.subr.mxu0 0.0
  %593 = vmatpush1.msra.mxu0 0.0
  %594 = vmatprep.subr.mxu0 0.0
  %595 = vmatpush1.msra.mxu0 0.0
  %596 = vmatprep.subr.mxu0 0.0
  %597 = vmatpush1.msra.mxu0 0.0
  %598 = vmatprep.subr.mxu0 0.0
  %599 = vmatpush1.msra.mxu0 0.0
  %600 = vmatprep.subr.mxu0 0.0
  %601 = vmatpush1.msra.mxu0 0.0
  %602 = vmatprep.subr.mxu0 0.0
  %603 = vmatpush1.msra.mxu0 0.0
  %604 = vmatprep.subr.mxu0 0.0
  %605 = vmatpush1.msra.mxu0 0.0
  %606 = vmatprep.subr.mxu0 0.0
  %607 = vmatpush1.msra.mxu0 0.0
  %608 = vmatprep.subr.mxu0 0.0
  %609 = vmatpush1.msra.mxu0 0.0
  %610 = vmatprep.subr.mxu0 0.0
  %611 = vmatpush1.msra.mxu0 0.0
  %612 = vmatprep.subr.mxu0 0.0
  %613 = vmatpush1.msra.mxu0 0.0
  %614 = vmatprep.subr.mxu0 0.0
  %615 = vmatpush1.msra.mxu0 0.0
  %616 = vmatprep.subr.mxu0 0.0
  %617 = vmatpush1.msra.mxu0 0.0
  %618 = vmatprep.subr.mxu0 0.0
  %619 = vmatpush1.msra.mxu0 0.0
  %620 = vmatprep.subr.mxu0 0.0
  %621 = vmatpush1.msra.mxu0 0.0
  %622 = vmatprep.subr.mxu0 0.0
  %623 = vmatpush1.msra.mxu0 0.0
  %624 = vmatprep.subr.mxu0 0.0
  %625 = vmatpush1.msra.mxu0 0.0
  %626 = vmatprep.subr.mxu0 0.0
  %627 = vmatpush1.msra.mxu0 0.0
  %628 = vmatprep.subr.mxu0 0.0
  %629 = vmatpush1.msra.mxu0 0.0
  %630 = vmatprep.subr.mxu0 0.0
  %631 = vmatpush1.msra.mxu0 0.0
  %632 = vmatprep.subr.mxu0 0.0
  %633 = vmatpush1.msra.mxu0 0.0
  %634 = vmatprep.subr.mxu0 0.0
  %635 = vmatpush1.msra.mxu0 0.0
  %636 = vmatprep.subr.mxu0 0.0
  %637 = vmatpush1.msra.mxu0 0.0
  %638 = vmatprep.mubr.f32.mxu0 0.0
  %639 = vmatmul.mubr.f32.gmra.mrb[0].mxu0 %v572
  %v640 = vpop.f32.mrb[0].mxu0
  %v641 = vadd.f32 0.0, %v640
  %v642 = vpop.f32.mrb[0].mxu0
  %643 = vdwg.mxu0
  %v644 = vadd.f32 %v178, %v641
  %v645 = vtanh.pop %v644
  %v647 = vsel %vm195, %v645, 0
  %649 = vmatprep.subr.mxu0 0.0
  %650 = vmatpush1.msra.mxu0 %v191
  %651 = vmatprep.subr.mxu0 0.0
  %652 = vmatpush1.msra.mxu0 %v192
  %653 = vmatprep.subr.mxu0 0.0
  %654 = vmatpush1.msra.mxu0 %v193
  %655 = vmatprep.subr.mxu0 0.0
  %656 = vmatpush1.msra.mxu0 %v194
  %657 = vmatprep.subr.mxu0 0.0
  %658 = vmatpush1.msra.mxu0 0.0
  %659 = vmatprep.subr.mxu0 0.0
  %660 = vmatpush1.msra.mxu0 0.0
  %661 = vmatprep.subr.mxu0 0.0
  %662 = vmatpush1.msra.mxu0 0.0
  %663 = vmatprep.subr.mxu0 0.0
  %664 = vmatpush1.msra.mxu0 0.0
  %665 = vmatprep.subr.mxu0 0.0
  %666 = vmatpush1.msra.mxu0 0.0
  %667 = vmatprep.subr.mxu0 0.0
  %668 = vmatpush1.msra.mxu0 0.0
  %669 = vmatprep.subr.mxu0 0.0
  %670 = vmatpush1.msra.mxu0 0.0
  %671 = vmatprep.subr.mxu0 0.0
  %672 = vmatpush1.msra.mxu0 0.0
  %673 = vmatprep.subr.mxu0 0.0
  %674 = vmatpush1.msra.mxu0 0.0
  %675 = vmatprep.subr.mxu0 0.0
  %676 = vmatpush1.msra.mxu0 0.0
  %677 = vmatprep.subr.mxu0 0.0
  %678 = vmatpush1.msra.mxu0 0.0
  %679 = vmatprep.subr.mxu0 0.0
  %680 = vmatpush1.msra.mxu0 0.0
  %681 = vmatprep.subr.mxu0 0.0
  %682 = vmatpush1.msra.mxu0 0.0
  %683 = vmatprep.subr.mxu0 0.0
  %684 = vmatpush1.msra.mxu0 0.0
  %685 = vmatprep.subr.mxu0 0.0
  %686 = vmatpush1.msra.mxu0 0.0
  %687 = vmatprep.subr.mxu0 0.0
  %688 = vmatpush1.msra.mxu0 0.0
  %689 = vmatprep.subr.mxu0 0.0
  %690 = vmatpush1.msra.mxu0 0.0
  %691 = vmatprep.subr.mxu0 0.0
  %692 = vmatpush1.msra.mxu0 0.0
  %693 = vmatprep.subr.mxu0 0.0
  %694 = vmatpush1.msra.mxu0 0.0
  %695 = vmatprep.subr.mxu0 0.0
  %696 = vmatpush1.msra.mxu0 0.0
  %697 = vmatprep.subr.mxu0 0.0
  %698 = vmatpush1.msra.mxu0 0.0
  %699 = vmatprep.subr.mxu0 0.0
  %700 = vmatpush1.msra.mxu0 0.0
  %701 = vmatprep.subr.mxu0 0.0
  %702 = vmatpush1.msra.mxu0 0.0
  %703 = vmatprep.subr.mxu0 0.0
  %704 = vmatpush1.msra.mxu0 0.0
  %705 = vmatprep.subr.mxu0 0.0
  %706 = vmatpush1.msra.mxu0 0.0
  %707 = vmatprep.subr.mxu0 0.0
  %708 = vmatpush1.msra.mxu0 0.0
  %709 = vmatprep.subr.mxu0 0.0
  %710 = vmatpush1.msra.mxu0 0.0
  %711 = vmatprep.subr.mxu0 0.0
  %712 = vmatpush1.msra.mxu0 0.0
  %713 = vmatprep.mubr.f32.mxu0 0.0
  %714 = vmatmul.mubr.f32.gmra.mrb[0].mxu0 %v647
  %v715 = vpop.f32.mrb[0].mxu0
  %v716 = vadd.f32 0.0, %v715
  %v717 = vpop.f32.mrb[0].mxu0
  %718 = vdwg.mxu0
  %v719 = vadd.f32 %v183, %v716
  %v720 = vtanh.pop %v719
  %v722 = vsel %vm195, %v720, 0
  %724 = vmatprep.subr.mxu0 0.0
  %725 = vmatpush1.msra.mxu0 %v191
  %726 = vmatprep.subr.mxu0 0.0
  %727 = vmatpush1.msra.mxu0 %v192
  %728 = vmatprep.subr.mxu0 0.0
  %729 = vmatpush1.msra.mxu0 %v193
  %730 = vmatprep.subr.mxu0 0.0
  %731 = vmatpush1.msra.mxu0 %v194
  %732 = vmatprep.subr.mxu0 0.0
  %733 = vmatpush1.msra.mxu0 0.0
  %734 = vmatprep.subr.mxu0 0.0
  %735 = vmatpush1.msra.mxu0 0.0
  %736 = vmatprep.subr.mxu0 0.0
  %737 = vmatpush1.msra.mxu0 0.0
  %738 = vmatprep.subr.mxu0 0.0
  %739 = vmatpush1.msra.mxu0 0.0
  %740 = vmatprep.subr.mxu0 0.0
  %741 = vmatpush1.msra.mxu0 0.0
  %742 = vmatprep.subr.mxu0 0.0
  %743 = vmatpush1.msra.mxu0 0.0
  %744 = vmatprep.subr.mxu0 0.0
  %745 = vmatpush1.msra.mxu0 0.0
  %746 = vmatprep.subr.mxu0 0.0
  %747 = vmatpush1.msra.mxu0 0.0
  %748 = vmatprep.subr.mxu0 0.0
  %749 = vmatpush1.msra.mxu0 0.0
  %750 = vmatprep.subr.mxu0 0.0
  %751 = vmatpush1.msra.mxu0 0.0
  %752 = vmatprep.subr.mxu0 0.0
  %753 = vmatpush1.msra.mxu0 0.0
  %754 = vmatprep.subr.mxu0 0.0
  %755 = vmatpush1.msra.mxu0 0.0
  %756 = vmatprep.subr.mxu0 0.0
  %757 = vmatpush1.msra.mxu0 0.0
  %758 = vmatprep.subr.mxu0 0.0
  %759 = vmatpush1.msra.mxu0 0.0
  %760 = vmatprep.subr.mxu0 0.0
  %761 = vmatpush1.msra.mxu0 0.0
  %762 = vmatprep.subr.mxu0 0.0
  %763 = vmatpush1.msra.mxu0 0.0
  %764 = vmatprep.subr.mxu0 0.0
  %765 = vmatpush1.msra.mxu0 0.0
  %766 = vmatprep.subr.mxu0 0.0
  %767 = vmatpush1.msra.mxu0 0.0
  %768 = vmatprep.subr.mxu0 0.0
  %769 = vmatpush1.msra.mxu0 0.0
  %770 = vmatprep.subr.mxu0 0.0
  %771 = vmatpush1.msra.mxu0 0.0
  %772 = vmatprep.subr.mxu0 0.0
  %773 = vmatpush1.msra.mxu0 0.0
  %774 = vmatprep.subr.mxu0 0.0
  %775 = vmatpush1.msra.mxu0 0.0
  %776 = vmatprep.subr.mxu0 0.0
  %777 = vmatpush1.msra.mxu0 0.0
  %778 = vmatprep.subr.mxu0 0.0
  %779 = vmatpush1.msra.mxu0 0.0
  %780 = vmatprep.subr.mxu0 0.0
  %781 = vmatpush1.msra.mxu0 0.0
  %782 = vmatprep.subr.mxu0 0.0
  %783 = vmatpush1.msra.mxu0 0.0
  %784 = vmatprep.subr.mxu0 0.0
  %785 = vmatpush1.msra.mxu0 0.0
  %786 = vmatprep.subr.mxu0 0.0
  %787 = vmatpush1.msra.mxu0 0.0
  %788 = vmatprep.mubr.f32.mxu0 0.0
  %789 = vmatmul.mubr.f32.gmra.mrb[0].mxu0 %v722
  %v790 = vpop.f32.mrb[0].mxu0
  %v791 = vadd.f32 0.0, %v790
  %v792 = vpop.f32.mrb[0].mxu0
  %793 = vdwg.mxu0
  %v794 = vadd.f32 %v188, %v791
  %v795 = vtanh.pop %v794
  %v796 = vld [vmem:[%s3] sm:$0xff]
  %v797 = vld [vmem:[%s3 + $0x8] sm:$0xff]
  %v798 = vld [vmem:[%s3 + $0x10] sm:$0xff]
  %v799 = vld [vmem:[%s3 + $0x18] sm:$0xff]
  %v800 = vld [vmem:[%s4] sm:$0x1]
  %v802 = vlaneseq
  %v803 = vshrl.u32 %v802, 7
  %v804 = vsub.s32 0, %v803
  %v805 = vrot.slane %v800, %v804
  %v808 = vsel %vm195, %v795, 0
  %810 = vmatprep.subr.mxu0 0.0
  %811 = vmatpush1.msra.mxu0 %v796
  %812 = vmatprep.subr.mxu0 0.0
  %813 = vmatpush1.msra.mxu0 %v797
  %814 = vmatprep.subr.mxu0 0.0
  %815 = vmatpush1.msra.mxu0 %v798
  %816 = vmatprep.subr.mxu0 0.0
  %817 = vmatpush1.msra.mxu0 %v799
  %818 = vmatprep.subr.mxu0 0.0
  %819 = vmatpush1.msra.mxu0 0.0
  %820 = vmatprep.subr.mxu0 0.0
  %821 = vmatpush1.msra.mxu0 0.0
  %822 = vmatprep.subr.mxu0 0.0
  %823 = vmatpush1.msra.mxu0 0.0
  %824 = vmatprep.subr.mxu0 0.0
  %825 = vmatpush1.msra.mxu0 0.0
  %826 = vmatprep.subr.mxu0 0.0
  %827 = vmatpush1.msra.mxu0 0.0
  %828 = vmatprep.subr.mxu0 0.0
  %829 = vmatpush1.msra.mxu0 0.0
  %830 = vmatprep.subr.mxu0 0.0
  %831 = vmatpush1.msra.mxu0 0.0
  %832 = vmatprep.subr.mxu0 0.0
  %833 = vmatpush1.msra.mxu0 0.0
  %834 = vmatprep.subr.mxu0 0.0
  %835 = vmatpush1.msra.mxu0 0.0
  %836 = vmatprep.subr.mxu0 0.0
  %837 = vmatpush1.msra.mxu0 0.0
  %838 = vmatprep.subr.mxu0 0.0
  %839 = vmatpush1.msra.mxu0 0.0
  %840 = vmatprep.subr.mxu0 0.0
  %841 = vmatpush1.msra.mxu0 0.0
  %842 = vmatprep.subr.mxu0 0.0
  %843 = vmatpush1.msra.mxu0 0.0
  %844 = vmatprep.subr.mxu0 0.0
  %845 = vmatpush1.msra.mxu0 0.0
  %846 = vmatprep.subr.mxu0 0.0
  %847 = vmatpush1.msra.mxu0 0.0
  %848 = vmatprep.subr.mxu0 0.0
  %849 = vmatpush1.msra.mxu0 0.0
  %850 = vmatprep.subr.mxu0 0.0
  %851 = vmatpush1.msra.mxu0 0.0
  %852 = vmatprep.subr.mxu0 0.0
  %853 = vmatpush1.msra.mxu0 0.0
  %854 = vmatprep.subr.mxu0 0.0
  %855 = vmatpush1.msra.mxu0 0.0
  %856 = vmatprep.subr.mxu0 0.0
  %857 = vmatpush1.msra.mxu0 0.0
  %858 = vmatprep.subr.mxu0 0.0
  %859 = vmatpush1.msra.mxu0 0.0
  %860 = vmatprep.subr.mxu0 0.0
  %861 = vmatpush1.msra.mxu0 0.0
  %862 = vmatprep.subr.mxu0 0.0
  %863 = vmatpush1.msra.mxu0 0.0
  %864 = vmatprep.subr.mxu0 0.0
  %865 = vmatpush1.msra.mxu0 0.0
  %866 = vmatprep.subr.mxu0 0.0
  %867 = vmatpush1.msra.mxu0 0.0
  %868 = vmatprep.subr.mxu0 0.0
  %869 = vmatpush1.msra.mxu0 0.0
  %870 = vmatprep.subr.mxu0 0.0
  %871 = vmatpush1.msra.mxu0 0.0
  %872 = vmatprep.subr.mxu0 0.0
  %873 = vmatpush1.msra.mxu0 0.0
  %874 = vmatprep.mubr.f32.mxu0 0.0
  %875 = vmatmul.mubr.f32.gmra.mrb[0].mxu0 %v808
  %v876 = vpop.f32.mrb[0].mxu0
  %v877 = vadd.f32 %v805, %v876
  %v878 = vpop.f32.mrb[0].mxu0
  %879 = vdwg.mxu0
  %880 = vst [vmem:[%s5] sm:$0xff] %v877
  // Predicated region
  $region22: #{rnn_forward.1} parent=0 // pred_check
    _
  $region23: #{rnn_forward.1} parent=0 // pred_check_branch
    %882 = sbr.rel (0) target = $region25
  $region24: #{rnn_forward.1} parent=0 // pred_region
    _
  $region25: #{rnn_forward.1} parent=0 // pred_fallthru
    _
  // Predicated region
  $region26: #{rnn_forward.1} parent=0 // pred_check
    _
  $region27: #{rnn_forward.1} parent=0 // pred_check_branch
    %884 = sbr.rel (0) target = $region29
  $region28: #{rnn_forward.1} parent=0 // pred_region
    _
  $region29: #{rnn_forward.1} parent=0 // pred_fallthru
    _

</llo_original>
